<compile_context>
chip_gen: v7x
topology: tpu7x:2x2x1
jax: 0.10.0
libtpu: 0.0.40
codegen_flags: <defaults>
</compile_context>

<pallas_src>
import numpy as np
import jax
import jax.numpy as jnp
from jax.experimental import pallas as pl
from jax.experimental.pallas import tpu as pltpu


def _round_up(x, m):
    return ((x + m - 1) // m) * m


# ----------------------------------------------------------------------------
# Pallas kernel: whole MLP hot path (fused actor|critic branches + value head).
# ----------------------------------------------------------------------------
def mlp_base_kernel(x_ref, w1_ref, b1_ref, w2_ref, b2_ref, w3_ref, b3_ref,
                    h2_ref, val_ref):
    # Fused layer 1: [actor | critic] columns in one lane-full (in, 2H) bf16 matmul.
    xb = x_ref[...].astype(jnp.bfloat16)
    h1 = jnp.tanh(
        jnp.dot(xb, w1_ref[...], preferred_element_type=jnp.float32) + b1_ref[...])

    # Fused layer 2: block-diagonal (2H, 2H) weight keeps the two branches independent.
    h2 = jnp.tanh(
        jnp.dot(h1.astype(jnp.bfloat16), w2_ref[...],
                preferred_element_type=jnp.float32) + b2_ref[...])

    # critic_linear head: VPU multiply + XLU lane reduce instead of a 1-column MXU pass.
    # w3 row is zero over the actor half, so the full-lane reduce equals hc @ W3.T.
    v = jnp.sum(h2 * w3_ref[...], axis=-1, keepdims=True) + b3_ref[0]

    h2_ref[...] = h2                                    # [hidden_actor | hidden_critic]
    val_ref[...] = jnp.broadcast_to(v, val_ref.shape)   # lane-dense value block


def mlp_base_forward(x, params):
    """x: (B, num_inputs) f32.  params: dict with fused/pre-packed weights."""
    B, num_inputs = x.shape
    H2 = params["w1"].shape[1]      # 2 * hidden_size
    H = H2 // 2
    VW = 128                        # lane-dense width for the value output block

    # Batch tiling (multiple of 8 sublanes); weights stay resident across steps.
    TB = min(512, _round_up(B, 8))
    Bp = _round_up(B, TB)
    if Bp != B:
        x = jnp.pad(x, ((0, Bp - B), (0, 0)))
    grid = (Bp // TB,)

    def const_spec(a):
        return pl.BlockSpec(a.shape, lambda i: (0,) * a.ndim)

    h2_full, val_full = pl.pallas_call(
        mlp_base_kernel,
        out_shape=(jax.ShapeDtypeStruct((Bp, H2), jnp.float32),   # [actor | critic]
                   jax.ShapeDtypeStruct((Bp, VW), jnp.float32)),  # padded value
        grid=grid,
        in_specs=[
            pl.BlockSpec((TB, num_inputs), lambda i: (i, 0)),     # x: batch-tiled
            const_spec(params["w1"]),                             # fused W1 (bf16)
            const_spec(params["b1"]),
            const_spec(params["w2"]),                             # block-diag W2 (bf16)
            const_spec(params["b2"]),
            const_spec(params["w3_row"]),                         # zero-padded W3 row
            pl.BlockSpec(memory_space=pltpu.MemorySpace.SMEM),    # scalar b3
        ],
        out_specs=(pl.BlockSpec((TB, H2), lambda i: (i, 0)),
                   pl.BlockSpec((TB, VW), lambda i: (i, 0))),
        compiler_params=pltpu.CompilerParams(
            dimension_semantics=("parallel",)),   # megacore sharding on v7x
    )(x, params["w1"], params["b1"], params["w2"], params["b2"],
      params["w3_row"], params["b3"])

    value = val_full[:B, :1]
    hidden_actor = h2_full[:B, :H]
    return value, hidden_actor


# ----------------------------------------------------------------------------
# Deterministic parameter init (mimics init_: orthogonal weight * sqrt(2), bias 0)
# and pre-packing into the fused kernel layout.
# ----------------------------------------------------------------------------
def orthogonal(key, out_features, in_features, gain):
    a = jax.random.normal(key, (out_features, in_features), dtype=jnp.float32)
    flat = a if out_features >= in_features else a.T
    q, r = jnp.linalg.qr(flat)
    q = q * jnp.sign(jnp.diag(r))[None, :]
    if out_features < in_features:
        q = q.T
    return gain * q  # (out_features, in_features), PyTorch Linear layout


def make_params(key, num_inputs, hidden_size):
    gain = float(np.sqrt(2.0))
    ks = jax.random.split(key, 5)
    H = hidden_size
    # PyTorch Linear weight is (out, in); pre-transpose to (in, out).
    w1a = orthogonal(ks[0], H, num_inputs, gain).T
    w2a = orthogonal(ks[1], H, H, gain).T
    w1c = orthogonal(ks[2], H, num_inputs, gain).T
    w2c = orthogonal(ks[3], H, H, gain).T
    w3 = orthogonal(ks[4], 1, H, gain).T            # (H, 1)

    # Fused layer-1 weight [actor | critic] -> (in, 2H); biases are zero at init.
    w1 = jnp.concatenate([w1a, w1c], axis=1)
    b1 = jnp.zeros((1, 2 * H), jnp.float32)
    # Fused block-diagonal layer-2 weight -> (2H, 2H).
    w2 = jnp.zeros((2 * H, 2 * H), jnp.float32)
    w2 = w2.at[:H, :H].set(w2a).at[H:, H:].set(w2c)
    b2 = jnp.zeros((1, 2 * H), jnp.float32)
    # critic_linear as a (1, 2H) row: zero over the actor half.
    w3_row = jnp.zeros((1, 2 * H), jnp.float32).at[:, H:].set(w3[:, 0][None, :])
    b3 = jnp.zeros((1,), jnp.float32)

    return {
        # kernel (packed) params — matmul weights stored bf16 for the MXU
        "w1": w1.astype(jnp.bfloat16), "b1": b1,
        "w2": w2.astype(jnp.bfloat16), "b2": b2,
        "w3_row": w3_row, "b3": b3,
        # unfused f32 copies kept only for the reference check
        "w1a": w1a, "w2a": w2a, "w1c": w1c, "w2c": w2c, "w3": w3,
    }


# TODO(synk): recurrent=True path (GRU with episode-boundary masking) is sequential
# and data-dependent; not implemented here (default MLPBase is non-recurrent).

if __name__ == "__main__":
    key = jax.random.PRNGKey(0)
    k_param, k_x = jax.random.split(key)

    batch = 8
    num_inputs = 32      # input_shape[0]
    hidden_size = 64     # module default

    params = make_params(k_param, num_inputs, hidden_size)
    x = jax.random.normal(k_x, (batch, num_inputs), dtype=jnp.float32)
    rnn_hxs = jnp.zeros((batch, 1), jnp.float32)       # recurrent_hidden_state_size == 1
    masks = jnp.ones((batch, 1), jnp.float32)          # unused in non-recurrent branch
    last_actions = jnp.zeros((batch, 4), jnp.float32)  # unused in non-recurrent branch

    value, hidden_actor = mlp_base_forward(x, params)
    # forward returns (critic_linear(hidden_critic), hidden_actor, rnn_hxs)
    outputs = (value, hidden_actor, rnn_hxs)
    jax.block_until_ready(outputs)

    # Reference matching the kernel's bf16-operand / f32-accumulate math (biases are 0).
    xb = x.astype(jnp.bfloat16)

    def ref_branch(wa1, wa2):
        h = jnp.tanh(jnp.dot(xb, wa1.astype(jnp.bfloat16),
                             preferred_element_type=jnp.float32))
        return jnp.tanh(jnp.dot(h.astype(jnp.bfloat16), wa2.astype(jnp.bfloat16),
                                preferred_element_type=jnp.float32))

    ha_ref = ref_branch(params["w1a"], params["w2a"])
    hc_ref = ref_branch(params["w1c"], params["w2c"])
    v_ref = hc_ref @ params["w3"]

    # Full-precision module semantics (loose sanity check on bf16 impact).
    ha_f32 = jnp.tanh(jnp.tanh(x @ params["w1a"]) @ params["w2a"])
    hc_f32 = jnp.tanh(jnp.tanh(x @ params["w1c"]) @ params["w2c"])
    v_f32 = hc_f32 @ params["w3"]

    assert value.shape == (batch, 1)
    assert hidden_actor.shape == (batch, hidden_size)
    assert jnp.allclose(hidden_actor, ha_ref, atol=1e-3), "actor mismatch (bf16 ref)"
    assert jnp.allclose(value, v_ref, atol=1e-3), "value mismatch (bf16 ref)"
    assert jnp.allclose(hidden_actor, ha_f32, atol=1e-1), "actor mismatch (f32 ref)"
    assert jnp.allclose(value, v_f32, atol=1e-1), "value mismatch (f32 ref)"
    print("KERNEL_OK")
</pallas_src>

<mosaic_0001>
module attributes {stable_mosaic.version = 11 : i64} {
  func.func @mlp_base_kernel(%arg0: i32, %arg1: memref<8x32xf32, #tpu.memory_space<vmem>>, %arg2: memref<32x128xbf16, #tpu.memory_space<vmem>>, %arg3: memref<1x128xf32, #tpu.memory_space<vmem>>, %arg4: memref<128x128xbf16, #tpu.memory_space<vmem>>, %arg5: memref<1x128xf32, #tpu.memory_space<vmem>>, %arg6: memref<1x128xf32, #tpu.memory_space<vmem>>, %arg7: memref<1xf32, #tpu.memory_space<smem>>, %arg8: memref<8x128xf32, #tpu.memory_space<vmem>>, %arg9: memref<8x128xf32, #tpu.memory_space<vmem>>) attributes {dimension_semantics = [#tpu.dimension_semantics<parallel>], iteration_bounds = array<i64: 1>, scalar_prefetch = 0 : i64, scratch_operands = 0 : i64, tpu.core_type = #tpu.core_type<tc>, window_params = [{transform_indices = @transform_0, window_bounds = array<i64: 8, 32>}, {pipeline_mode = #tpu.pipeline_mode<synchronous>, transform_indices = @transform_1, window_bounds = array<i64: 32, 128>}, {pipeline_mode = #tpu.pipeline_mode<synchronous>, transform_indices = @transform_2, window_bounds = array<i64: 1, 128>}, {pipeline_mode = #tpu.pipeline_mode<synchronous>, transform_indices = @transform_3, window_bounds = array<i64: 128, 128>}, {pipeline_mode = #tpu.pipeline_mode<synchronous>, transform_indices = @transform_4, window_bounds = array<i64: 1, 128>}, {pipeline_mode = #tpu.pipeline_mode<synchronous>, transform_indices = @transform_5, window_bounds = array<i64: 1, 128>}, {transform_indices = @transform_6, window_bounds = array<i64: 1>}, {transform_indices = @transform_7, window_bounds = array<i64: 8, 128>}, {transform_indices = @transform_8, window_bounds = array<i64: 8, 128>}]} {
    %c0 = arith.constant 0 : index
    %c0_0 = arith.constant 0 : index
    %0 = vector.load %arg1[%c0, %c0_0] : memref<8x32xf32, #tpu.memory_space<vmem>>, vector<8x32xf32>
    %1 = arith.truncf %0 : vector<8x32xf32> to vector<8x32xbf16>
    %c0_1 = arith.constant 0 : index
    %c0_2 = arith.constant 0 : index
    %2 = vector.load %arg2[%c0_1, %c0_2] : memref<32x128xbf16, #tpu.memory_space<vmem>>, vector<32x128xbf16>
    %cst = arith.constant dense<0.000000e+00> : vector<8x128xf32>
    %3 = tpu.matmul %1, %2, %cst {dimension_numbers = #tpu.dot_dimension_numbers<[1], [0], [0], [1], [0, 0, 1, 1], [], []>} : vector<8x32xbf16>, vector<32x128xbf16>, vector<8x128xf32> -> vector<8x128xf32>
    %c0_3 = arith.constant 0 : index
    %c0_4 = arith.constant 0 : index
    %4 = vector.load %arg3[%c0_3, %c0_4] : memref<1x128xf32, #tpu.memory_space<vmem>>, vector<1x128xf32>
    %5 = vector.broadcast %4 : vector<1x128xf32> to vector<8x128xf32>
    %6 = arith.addf %3, %5 : vector<8x128xf32>
    %7 = math.tanh %6 : vector<8x128xf32>
    %8 = arith.truncf %7 : vector<8x128xf32> to vector<8x128xbf16>
    %c0_5 = arith.constant 0 : index
    %c0_6 = arith.constant 0 : index
    %9 = vector.load %arg4[%c0_5, %c0_6] : memref<128x128xbf16, #tpu.memory_space<vmem>>, vector<128x128xbf16>
    %cst_7 = arith.constant dense<0.000000e+00> : vector<8x128xf32>
    %10 = tpu.matmul %8, %9, %cst_7 {dimension_numbers = #tpu.dot_dimension_numbers<[1], [0], [0], [1], [0, 0, 1, 1], [], []>} : vector<8x128xbf16>, vector<128x128xbf16>, vector<8x128xf32> -> vector<8x128xf32>
    %c0_8 = arith.constant 0 : index
    %c0_9 = arith.constant 0 : index
    %11 = vector.load %arg5[%c0_8, %c0_9] : memref<1x128xf32, #tpu.memory_space<vmem>>, vector<1x128xf32>
    %12 = vector.broadcast %11 : vector<1x128xf32> to vector<8x128xf32>
    %13 = arith.addf %10, %12 : vector<8x128xf32>
    %14 = math.tanh %13 : vector<8x128xf32>
    %c0_10 = arith.constant 0 : index
    %c0_11 = arith.constant 0 : index
    %15 = vector.load %arg6[%c0_10, %c0_11] : memref<1x128xf32, #tpu.memory_space<vmem>>, vector<1x128xf32>
    %16 = vector.broadcast %15 : vector<1x128xf32> to vector<8x128xf32>
    %17 = arith.mulf %14, %16 : vector<8x128xf32>
    %cst_12 = arith.constant dense<0.000000e+00> : vector<8xf32>
    %18 = vector.multi_reduction <add>, %17, %cst_12 [1] : vector<8x128xf32> to vector<8xf32>
    %19 = vector.shape_cast %18 : vector<8xf32> to vector<8x1xf32>
    %c0_13 = arith.constant 0 : index
    %20 = memref.load %arg7[%c0_13] : memref<1xf32, #tpu.memory_space<smem>>
    %21 = vector.broadcast %20 : f32 to vector<8x1xf32>
    %22 = arith.addf %19, %21 : vector<8x1xf32>
    %c0_14 = arith.constant 0 : index
    %c0_15 = arith.constant 0 : index
    %23 = vector.load %arg8[%c0_14, %c0_15] : memref<8x128xf32, #tpu.memory_space<vmem>>, vector<8x128xf32>
    tpu.vector_store %arg8[%c0_14, %c0_15], %14 {strides = array<i32>} : memref<8x128xf32, #tpu.memory_space<vmem>>, vector<8x128xf32>,
    %24 = vector.shape_cast %22 : vector<8x1xf32> to vector<8x1xf32>
    %25 = vector.broadcast %24 : vector<8x1xf32> to vector<8x128xf32>
    %c0_16 = arith.constant 0 : index
    %c0_17 = arith.constant 0 : index
    %26 = vector.load %arg9[%c0_16, %c0_17] : memref<8x128xf32, #tpu.memory_space<vmem>>, vector<8x128xf32>
    tpu.vector_store %arg9[%c0_16, %c0_17], %25 {strides = array<i32>} : memref<8x128xf32, #tpu.memory_space<vmem>>, vector<8x128xf32>,
    return
  }
  func.func @transform_0(%arg0: i32) -> (i32, i32) {
    %c0_i32 = arith.constant 0 : i32
    %c0_i32_0 = arith.constant 0 : i32
    return %arg0, %c0_i32 : i32, i32
  }
  func.func @transform_1(%arg0: i32) -> (i32, i32) {
    %c0_i32 = arith.constant 0 : i32
    %c0_i32_0 = arith.constant 0 : i32
    %c0_i32_1 = arith.constant 0 : i32
    return %c0_i32, %c0_i32_0 : i32, i32
  }
  func.func @transform_2(%arg0: i32) -> (i32, i32) {
    %c0_i32 = arith.constant 0 : i32
    %c0_i32_0 = arith.constant 0 : i32
    %c0_i32_1 = arith.constant 0 : i32
    return %c0_i32, %c0_i32_0 : i32, i32
  }
  func.func @transform_3(%arg0: i32) -> (i32, i32) {
    %c0_i32 = arith.constant 0 : i32
    %c0_i32_0 = arith.constant 0 : i32
    %c0_i32_1 = arith.constant 0 : i32
    return %c0_i32, %c0_i32_0 : i32, i32
  }
  func.func @transform_4(%arg0: i32) -> (i32, i32) {
    %c0_i32 = arith.constant 0 : i32
    %c0_i32_0 = arith.constant 0 : i32
    %c0_i32_1 = arith.constant 0 : i32
    return %c0_i32, %c0_i32_0 : i32, i32
  }
  func.func @transform_5(%arg0: i32) -> (i32, i32) {
    %c0_i32 = arith.constant 0 : i32
    %c0_i32_0 = arith.constant 0 : i32
    %c0_i32_1 = arith.constant 0 : i32
    return %c0_i32, %c0_i32_0 : i32, i32
  }
  func.func @transform_6(%arg0: i32) -> i32 {
    %c0_i32 = arith.constant 0 : i32
    %c0_i32_0 = arith.constant 0 : i32
    return %c0_i32 : i32
  }
  func.func @transform_7(%arg0: i32) -> (i32, i32) {
    %c0_i32 = arith.constant 0 : i32
    %c0_i32_0 = arith.constant 0 : i32
    return %arg0, %c0_i32 : i32, i32
  }
  func.func @transform_8(%arg0: i32) -> (i32, i32) {
    %c0_i32 = arith.constant 0 : i32
    %c0_i32_0 = arith.constant 0 : i32
    return %arg0, %c0_i32 : i32, i32
  }
}

</mosaic_0001>

<llo_original>
// kernel: tpu_custom_call.1
$region0: #{tpu_custom_call.1}
  #allocation0 [shape = 'u32[]', space=smem, size = 0x4, offset = 0x4, fixed_abs, tag = 'smem constant byte address 0x4 - core index']
  #allocation1 [shape = 'u32[144,128]{1,0:T(1,128)}', space=vmem, size = 0x12000, scoped, tag = 'internal scratch']
  #allocation2 [shape = 'f32[1]{0:T(128)S(6)}', space=smem, size = 0x200, scoped, tag = 'scoped memory for tpu_custom_call.1']
  %s0 = inlined_call_operand.hbm [shape: f32[8,32], index: 0, kind: input, shape index: {}]
  %s1 = inlined_call_operand.hbm [shape: bf16[32,128], index: 1, kind: input, shape index: {}]
  %s2 = inlined_call_operand.vmem [shape: f32[1,128], index: 2, kind: input, shape index: {}]
  %s3 = inlined_call_operand.hbm [shape: bf16[128,128], index: 3, kind: input, shape index: {}]
  %s4 = inlined_call_operand.vmem [shape: f32[1,128], index: 4, kind: input, shape index: {}]
  %s5 = inlined_call_operand.vmem [shape: f32[1,128], index: 5, kind: input, shape index: {}]
  %s6 = inlined_call_operand.<no memory space> [shape: f32[1], index: 6, kind: input, shape index: {}]
  %s7 = inlined_call_operand.hbm [shape: f32[8,128], index: 7, kind: output, shape index: {0}]
  %s8 = inlined_call_operand.hbm [shape: f32[8,128], index: 8, kind: output, shape index: {1}]
  %9 = xla_tuple %s7, %s8
  %s10 = sld [smem:[#allocation0]]
  $region58: #{tpu_custom_call.1} parent=0
    _
  %s12 = ssub.s32 1, %s10
  %s13 = scalar_select 0, %s12, %s10
  %14 = sst [smem:[#allocation2]] %s6
  $region1: #{tpu_custom_call.1} parent=0
    #allocation3 [shape = 'u8[4096]{0}', space=vmem, size = 0x1000, scoped, tag = 'input window, operand 0, single buffered']
    #allocation4 [shape = 's32[1]{0}', space=sflag, size = 0x4, scoped, tag = 'scoped memory for tpu_custom_call.1']
    #allocation5 [shape = 's32[1]{0}', space=sflag, size = 0x4, scoped, tag = 'scoped memory for tpu_custom_call.1']
    #allocation6 [shape = 'u8[8192]{0}', space=vmem, size = 0x2000, scoped, tag = 'input window, operand 1, single buffered']
    #allocation7 [shape = 's32[1]{0}', space=sflag, size = 0x4, scoped, tag = 'scoped memory for tpu_custom_call.1']
    #allocation8 [shape = 'u8[32768]{0}', space=vmem, size = 0x8000, scoped, tag = 'input window, operand 3, single buffered']
    #allocation9 [shape = 'u8[4096]{0}', space=vmem, size = 0x1000, scoped, tag = 'output window, operand 0, single buffered']
    #allocation10 [shape = 'u8[4096]{0}', space=vmem, size = 0x1000, scoped, tag = 'output window, operand 1, single buffered']
    #allocation11 [shape = 's32[1]{0}', space=sflag, size = 0x4, scoped, tag = 'scoped memory for tpu_custom_call.1']
    %15 = vsyncpa [#allocation4], 0
    %16 = vsyncpa [#allocation7], 0
    %17 = vsyncpa [#allocation5], 0
    %18 = vsyncpa [#allocation11], 0
    // Predicated region
    $region2: #{tpu_custom_call.1} parent=1 // pred_check
      _
    $region3: #{tpu_custom_call.1} parent=1 // pred_check_branch
      %20 = sbr.rel (0) target = $region5
    $region4: #{tpu_custom_call.1} parent=1 // pred_region
      %s22 = ssub.s32 128, 128
      %23 = vsyncadd [#allocation4], %s22
      %s25 = sshll.u32 [#allocation3], 4
      %s26 = int_to_ptr.vmem [resolvable:$true] %s25
      %28 = dma.hbm_to_vmem [thread:$0]  %s0, 128, %s26, [#allocation4]
    $region5: #{tpu_custom_call.1} parent=1 // pred_fallthru
      _
    // Predicated region
    $region6: #{tpu_custom_call.1} parent=1 // pred_check
      _
    $region7: #{tpu_custom_call.1} parent=1 // pred_check_branch
      %30 = sbr.rel (0) target = $region9
    $region8: #{tpu_custom_call.1} parent=1 // pred_region
      %s32 = ssub.s32 256, 256
      %33 = vsyncadd [#allocation7], %s32
      %s34 = sshll.u32 [#allocation6], 4
      %s35 = int_to_ptr.vmem [resolvable:$true] %s34
      %40 = dma.hbm_to_vmem [thread:$0]  %s1, 256, %s35, [#allocation7], 64, 64, 4
    $region9: #{tpu_custom_call.1} parent=1 // pred_fallthru
      _
    // Predicated region
    $region10: #{tpu_custom_call.1} parent=1 // pred_check
      _
    $region11: #{tpu_custom_call.1} parent=1 // pred_check_branch
      %42 = sbr.rel (0) target = $region13
    $region12: #{tpu_custom_call.1} parent=1 // pred_region
      _
    $region13: #{tpu_custom_call.1} parent=1 // pred_fallthru
      _
    // Predicated region
    $region14: #{tpu_custom_call.1} parent=1 // pred_check
      _
    $region15: #{tpu_custom_call.1} parent=1 // pred_check_branch
      %44 = sbr.rel (0) target = $region17
    $region16: #{tpu_custom_call.1} parent=1 // pred_region
      %s46 = ssub.s32 1024, 1024
      %47 = vsyncadd [#allocation7], %s46
      %s48 = sshll.u32 [#allocation8], 4
      %s49 = int_to_ptr.vmem [resolvable:$true] %s48
      %54 = dma.hbm_to_vmem [thread:$0]  %s3, 1024, %s49, [#allocation7], 64, 64, 4
    $region17: #{tpu_custom_call.1} parent=1 // pred_fallthru
      _
    // Predicated region
    $region18: #{tpu_custom_call.1} parent=1 // pred_check
      _
    $region19: #{tpu_custom_call.1} parent=1 // pred_check_branch
      %56 = sbr.rel (0) target = $region21
    $region20: #{tpu_custom_call.1} parent=1 // pred_region
      _
    $region21: #{tpu_custom_call.1} parent=1 // pred_fallthru
      _
    // Predicated region
    $region22: #{tpu_custom_call.1} parent=1 // pred_check
      _
    $region23: #{tpu_custom_call.1} parent=1 // pred_check_branch
      %58 = sbr.rel (0) target = $region25
    $region24: #{tpu_custom_call.1} parent=1 // pred_region
      _
    $region25: #{tpu_custom_call.1} parent=1 // pred_fallthru
      _
    // Predicated region
    $region26: #{tpu_custom_call.1} parent=1 // pred_check
      _
    $region27: #{tpu_custom_call.1} parent=1 // pred_check_branch
      %60 = sbr.rel (0) target = $region29
    $region28: #{tpu_custom_call.1} parent=1 // pred_region
      _
    $region29: #{tpu_custom_call.1} parent=1 // pred_fallthru
      _
    // Predicated region
    $region30: #{tpu_custom_call.1} parent=1 // pred_check
      _
    $region31: #{tpu_custom_call.1} parent=1 // pred_check_branch
      %62 = sbr.rel (0) target = $region33
    $region32: #{tpu_custom_call.1} parent=1 // pred_region
      %63 = dma.done [#allocation4], 128
    $region33: #{tpu_custom_call.1} parent=1 // pred_fallthru
      _
    // Predicated region
    $region34: #{tpu_custom_call.1} parent=1 // pred_check
      _
    $region35: #{tpu_custom_call.1} parent=1 // pred_check_branch
      %65 = sbr.rel (0) target = $region37
    $region36: #{tpu_custom_call.1} parent=1 // pred_region
      %66 = dma.done [#allocation7], 256
    $region37: #{tpu_custom_call.1} parent=1 // pred_fallthru
      _
    // Predicated region
    $region38: #{tpu_custom_call.1} parent=1 // pred_check
      _
    $region39: #{tpu_custom_call.1} parent=1 // pred_check_branch
      %68 = sbr.rel (0) target = $region41
    $region40: #{tpu_custom_call.1} parent=1 // pred_region
      %69 = dma.done [#allocation7], 1024
    $region41: #{tpu_custom_call.1} parent=1 // pred_fallthru
      _
    %v71 = vld [vmem:[#allocation3] sm:$0xff]
    %v72 = vpack.c.bf16 %v71, %v71
    %v73 = vld [vmem:[#allocation6] sm:$0xf]
    %v74 = vld [vmem:[#allocation6 + $0x4] sm:$0xf]
    %v75 = vld [vmem:[#allocation6 + $0x8] sm:$0xf]
    %v76 = vld [vmem:[#allocation6 + $0xc] sm:$0xf]
    %v77 = vld [vmem:[%s2] sm:$0x1]
    %v79 = vlaneseq
    %v80 = vshrl.u32 %v79, 7
    %v81 = vsub.s32 0, %v80
    %v82 = vrot.slane %v77, %v81
    %v88 = vunpack.c.l.b16 %v73
    %v89 = vunpack.c.l.b16 %v74
    %v90 = vunpack.c.l.b16 %v75
    %v91 = vunpack.c.l.b16 %v76
    %v92 = vpack.c.b16 %v89, %v88
    %v93 = vpack.c.b16 %v91, %v90
    %vm96 = vcmask 261120
    %v98 = vsel %vm96, %v72, 0
    %100 = vmatprep.subr.bf16.mxu0 0
    %101 = vmatpush1.bf16.msra.mxu0 %v92
    %102 = vmatprep.subr.bf16.mxu0 0
    %103 = vmatpush1.bf16.msra.mxu0 %v93
    %104 = vmatprep.subr.bf16.mxu0 0
    %105 = vmatpush1.bf16.msra.mxu0 0
    %106 = vmatprep.subr.bf16.mxu0 0
    %107 = vmatpush1.bf16.msra.mxu0 0
    %108 = vmatprep.subr.bf16.mxu0 0
    %109 = vmatpush1.bf16.msra.mxu0 0
    %110 = vmatprep.subr.bf16.mxu0 0
    %111 = vmatpush1.bf16.msra.mxu0 0
    %112 = vmatprep.subr.bf16.mxu0 0
    %113 = vmatpush1.bf16.msra.mxu0 0
    %114 = vmatprep.subr.bf16.mxu0 0
    %115 = vmatpush1.bf16.msra.mxu0 0
    %116 = vmatprep.subr.bf16.mxu0 0
    %117 = vmatpush1.bf16.msra.mxu0 0
    %118 = vmatprep.subr.bf16.mxu0 0
    %119 = vmatpush1.bf16.msra.mxu0 0
    %120 = vmatprep.subr.bf16.mxu0 0
    %121 = vmatpush1.bf16.msra.mxu0 0
    %122 = vmatprep.subr.bf16.mxu0 0
    %123 = vmatpush1.bf16.msra.mxu0 0
    %124 = vmatprep.subr.bf16.mxu0 0
    %125 = vmatpush1.bf16.msra.mxu0 0
    %126 = vmatprep.subr.bf16.mxu0 0
    %127 = vmatpush1.bf16.msra.mxu0 0
    %128 = vmatprep.subr.bf16.mxu0 0
    %129 = vmatpush1.bf16.msra.mxu0 0
    %130 = vmatprep.subr.bf16.mxu0 0
    %131 = vmatpush1.bf16.msra.mxu0 0
    %132 = vmatprep.mubr.bf16.mxu0 0
    %133 = vmatmul.mubr.bf16.gmra.mrb[0].mxu0 %v98
    %v134 = vpop.f32.mrb[0].mxu0
    %v135 = vadd.f32 %v82, %v134
    %v136 = vpop.f32.mrb[0].mxu0
    %v137 = vpop.f32.mrb[0].mxu0
    %v138 = vpop.f32.mrb[0].mxu0
    %139 = vdwg.mxu0
    %v140 = vtanh.pop %v135
    %v141 = vpack.c.bf16 %v140, %v140
    %v142 = vld [vmem:[#allocation8] sm:$0xf]
    %v143 = vld [vmem:[#allocation8 + $0x4] sm:$0xf]
    %v144 = vld [vmem:[#allocation8 + $0x8] sm:$0xf]
    %v145 = vld [vmem:[#allocation8 + $0xc] sm:$0xf]
    %v146 = vld [vmem:[#allocation8 + $0x10] sm:$0xf]
    %v147 = vld [vmem:[#allocation8 + $0x14] sm:$0xf]
    %v148 = vld [vmem:[#allocation8 + $0x18] sm:$0xf]
    %v149 = vld [vmem:[#allocation8 + $0x1c] sm:$0xf]
    %v150 = vld [vmem:[#allocation8 + $0x20] sm:$0xf]
    %v151 = vld [vmem:[#allocation8 + $0x24] sm:$0xf]
    %v152 = vld [vmem:[#allocation8 + $0x28] sm:$0xf]
    %v153 = vld [vmem:[#allocation8 + $0x2c] sm:$0xf]
    %v154 = vld [vmem:[#allocation8 + $0x30] sm:$0xf]
    %v155 = vld [vmem:[#allocation8 + $0x34] sm:$0xf]
    %v156 = vld [vmem:[#allocation8 + $0x38] sm:$0xf]
    %v157 = vld [vmem:[#allocation8 + $0x3c] sm:$0xf]
    %v158 = vld [vmem:[%s4] sm:$0x1]
    %v160 = vlaneseq
    %v161 = vshrl.u32 %v160, 7
    %v162 = vsub.s32 0, %v161
    %v163 = vrot.slane %v158, %v162
    %v181 = vunpack.c.l.b16 %v142
    %v182 = vunpack.c.l.b16 %v143
    %v183 = vunpack.c.l.b16 %v144
    %v184 = vunpack.c.l.b16 %v145
    %v185 = vunpack.c.l.b16 %v146
    %v186 = vunpack.c.l.b16 %v147
    %v187 = vunpack.c.l.b16 %v148
    %v188 = vunpack.c.l.b16 %v149
    %v189 = vunpack.c.l.b16 %v150
    %v190 = vunpack.c.l.b16 %v151
    %v191 = vunpack.c.l.b16 %v152
    %v192 = vunpack.c.l.b16 %v153
    %v193 = vunpack.c.l.b16 %v154
    %v194 = vunpack.c.l.b16 %v155
    %v195 = vunpack.c.l.b16 %v156
    %v196 = vunpack.c.l.b16 %v157
    %v197 = vpack.c.b16 %v182, %v181
    %v198 = vpack.c.b16 %v184, %v183
    %v199 = vpack.c.b16 %v186, %v185
    %v200 = vpack.c.b16 %v188, %v187
    %v201 = vpack.c.b16 %v190, %v189
    %v202 = vpack.c.b16 %v192, %v191
    %v203 = vpack.c.b16 %v194, %v193
    %v204 = vpack.c.b16 %v196, %v195
    %213 = vmatprep.subr.bf16.mxu0 0
    %214 = vmatpush1.bf16.msra.mxu0 %v197
    %215 = vmatprep.subr.bf16.mxu0 0
    %216 = vmatpush1.bf16.msra.mxu0 %v198
    %217 = vmatprep.subr.bf16.mxu0 0
    %218 = vmatpush1.bf16.msra.mxu0 %v199
    %219 = vmatprep.subr.bf16.mxu0 0
    %220 = vmatpush1.bf16.msra.mxu0 %v200
    %221 = vmatprep.subr.bf16.mxu0 0
    %222 = vmatpush1.bf16.msra.mxu0 %v201
    %223 = vmatprep.subr.bf16.mxu0 0
    %224 = vmatpush1.bf16.msra.mxu0 %v202
    %225 = vmatprep.subr.bf16.mxu0 0
    %226 = vmatpush1.bf16.msra.mxu0 %v203
    %227 = vmatprep.subr.bf16.mxu0 0
    %228 = vmatpush1.bf16.msra.mxu0 %v204
    %229 = vmatprep.subr.bf16.mxu0 0
    %230 = vmatpush1.bf16.msra.mxu0 0
    %231 = vmatprep.subr.bf16.mxu0 0
    %232 = vmatpush1.bf16.msra.mxu0 0
    %233 = vmatprep.subr.bf16.mxu0 0
    %234 = vmatpush1.bf16.msra.mxu0 0
    %235 = vmatprep.subr.bf16.mxu0 0
    %236 = vmatpush1.bf16.msra.mxu0 0
    %237 = vmatprep.subr.bf16.mxu0 0
    %238 = vmatpush1.bf16.msra.mxu0 0
    %239 = vmatprep.subr.bf16.mxu0 0
    %240 = vmatpush1.bf16.msra.mxu0 0
    %241 = vmatprep.subr.bf16.mxu0 0
    %242 = vmatpush1.bf16.msra.mxu0 0
    %243 = vmatprep.subr.bf16.mxu0 0
    %244 = vmatpush1.bf16.msra.mxu0 0
    %245 = vmatprep.mubr.bf16.mxu0 0
    %246 = vmatmul.mubr.bf16.gmra.mrb[0].mxu0 %v141
    %v247 = vpop.f32.mrb[0].mxu0
    %v248 = vadd.f32 %v163, %v247
    %v249 = vpop.f32.mrb[0].mxu0
    %v250 = vpop.f32.mrb[0].mxu0
    %v251 = vpop.f32.mrb[0].mxu0
    %252 = vdwg.mxu0
    %v253 = vtanh.pop %v248
    %v254 = vld [vmem:[%s5] sm:$0x1]
    %v256 = vlaneseq
    %v257 = vshrl.u32 %v256, 7
    %v258 = vsub.s32 0, %v257
    %v259 = vrot.slane %v254, %v258
    %v261 = vmul.f32 %v253, %v259
    %262 = vadd.xlane.f32.xlu0 %v261
    %v263 = vpop.xlane.xlu0 %262
    %s264 = sld [smem:[#allocation2]]
    %v265 = vstv %s264
    %v266 = vadd.f32 %v263, %v265
    %267 = vst [vmem:[#allocation9] sm:$0xff] %v253
    %268 = vst [vmem:[#allocation10] sm:$0xff] %v266
    // Predicated region
    $region42: #{tpu_custom_call.1} parent=1 // pred_check
      _
    $region43: #{tpu_custom_call.1} parent=1 // pred_check_branch
      %270 = sbr.rel (0) target = $region45
    $region44: #{tpu_custom_call.1} parent=1 // pred_region
      %s272 = ssub.s32 128, 128
      %273 = vsyncadd [#allocation5], %s272
      %s275 = sshll.u32 [#allocation9], 4
      %s276 = int_to_ptr.vmem [resolvable:$true] %s275
      %278 = dma.vmem_to_hbm [thread:$0]  %s276, 128, %s7, [#allocation5]
    $region45: #{tpu_custom_call.1} parent=1 // pred_fallthru
      _
    // Predicated region
    $region46: #{tpu_custom_call.1} parent=1 // pred_check
      _
    $region47: #{tpu_custom_call.1} parent=1 // pred_check_branch
      %280 = sbr.rel (0) target = $region49
    $region48: #{tpu_custom_call.1} parent=1 // pred_region
      %s282 = ssub.s32 128, 128
      %283 = vsyncadd [#allocation11], %s282
      %s285 = sshll.u32 [#allocation10], 4
      %s286 = int_to_ptr.vmem [resolvable:$true] %s285
      %288 = dma.vmem_to_hbm [thread:$0]  %s286, 128, %s8, [#allocation11]
    $region49: #{tpu_custom_call.1} parent=1 // pred_fallthru
      _
    // Predicated region
    $region50: #{tpu_custom_call.1} parent=1 // pred_check
      _
    $region51: #{tpu_custom_call.1} parent=1 // pred_check_branch
      %290 = sbr.rel (0) target = $region53
    $region52: #{tpu_custom_call.1} parent=1 // pred_region
      %291 = dma.done [#allocation5], 128
    $region53: #{tpu_custom_call.1} parent=1 // pred_fallthru
      _
    // Predicated region
    $region54: #{tpu_custom_call.1} parent=1 // pred_check
      _
    $region55: #{tpu_custom_call.1} parent=1 // pred_check_branch
      %293 = sbr.rel (0) target = $region57
    $region56: #{tpu_custom_call.1} parent=1 // pred_region
      %294 = dma.done [#allocation11], 128
    $region57: #{tpu_custom_call.1} parent=1 // pred_fallthru
      _
    %295 = vsyncpa [#allocation4], 1
    %296 = vsyncpa [#allocation7], 1
    %297 = vsyncpa [#allocation5], 1
    %298 = vsyncpa [#allocation11], 1

</llo_original>
